<compile_context>
chip_gen: v6e
topology: v6e:2x2x1
jax: 0.10.0
libtpu: 0.0.40
codegen_flags: <defaults>
</compile_context>

<pallas_src>
import functools
import math

import jax
import jax.numpy as jnp
from jax.experimental import pallas as pl
from jax.experimental.pallas import tpu as pltpu

_MIN_CHUNK_BYTES = 256 * 1024  # don't split below ~256 KiB per DMA


def _dma_copy_kernel(chunk_rows, n_chunks, x_hbm, o_hbm, sem):
    """One grid step: direct HBM->HBM DMA of this step's contiguous chunk."""
    if n_chunks == 1:
        # Whole-array copy (also covers awkward shapes / tiny tensors).
        cp = pltpu.make_async_copy(x_hbm, o_hbm, sem)
    else:
        i = pl.program_id(0)
        start = pl.multiple_of(i * chunk_rows, chunk_rows)
        cp = pltpu.make_async_copy(
            x_hbm.at[pl.ds(start, chunk_rows)],
            o_hbm.at[pl.ds(start, chunk_rows)],
            sem,
        )
    cp.start()
    cp.wait()


@jax.jit
def _identity_copy(x):
    """Identity copy via direct HBM->HBM DMA (no VMEM staging)."""
    orig_shape = x.shape
    total = math.prod(orig_shape)
    if total == 0:
        return x  # nothing to copy
    itemsize = jnp.dtype(x.dtype).itemsize
    total_bytes = total * itemsize

    # Lane-dense 2-D view when free (metadata reshape of a contiguous array);
    # only used so the array can be split into a few contiguous row-chunks.
    # The DMA itself is layout-agnostic, so awkward totals keep their shape.
    if total % 128 == 0:
        lane_w = next(w for w in (1024, 512, 256, 128) if total % w == 0)
        work = x.reshape(total // lane_w, lane_w)
    else:
        work = x

    # A few large, evenly dividing chunks: >=2 lets v7x's second TensorCore
    # drive its own DMA; each chunk stays >= ~256 KiB so per-DMA setup cost
    # is amortized.  Small tensors -> single whole-array DMA, grid=(1,).
    lead = work.shape[0]
    n_chunks = 1
    for cand in (8, 4, 2):
        if lead % cand == 0 and total_bytes // cand >= _MIN_CHUNK_BYTES:
            n_chunks = cand
            break
    chunk_rows = lead // n_chunks

    out = pl.pallas_call(
        functools.partial(_dma_copy_kernel, chunk_rows, n_chunks),
        out_shape=jax.ShapeDtypeStruct(work.shape, work.dtype),
        grid=(n_chunks,),
        in_specs=[pl.BlockSpec(memory_space=pl.ANY)],
        out_specs=pl.BlockSpec(memory_space=pl.ANY),
        scratch_shapes=[pltpu.SemaphoreType.DMA],
        compiler_params=pltpu.CompilerParams(
            # Parallel grid axis -> chunks sharded across both TensorCores on
            # v7x (measured no-op on single-TC v5e/v6e).
            dimension_semantics=("parallel",),
        ),
    )(work)

    return out.reshape(orig_shape)


def dummy_embedder_forward(input_, iteration=None, *, input_dim=None,
                           use_pallas=False):
    """DummyEmbedder.forward: identity on [..., input_dim].

    `iteration` is accepted and ignored (matches the PyTorch module).  The
    default (use_pallas=False) is the zero-HBM-traffic production path: the op
    is a pure identity, so the input array is returned as-is.  With
    use_pallas=True, a fresh output buffer is produced by a direct HBM->HBM
    DMA copy kernel.
    """
    if input_dim is None:
        input_dim = input_.shape[-1]
    assert input_.shape[-1] == input_dim
    if not use_pallas:
        return input_
    return _identity_copy(input_)


if __name__ == "__main__":
    key = jax.random.PRNGKey(0)
    input_dim = 4

    # 1) Default production path: pure identity, zero HBM traffic.
    x = jax.random.normal(key, (2, 16, 16, input_dim), dtype=jnp.float32)
    out0 = dummy_embedder_forward(x, iteration=0, input_dim=input_dim)
    assert out0 is x

    # 2) Pallas DMA-copy path, lane-dense single-chunk (2048 elements).
    out1 = jax.block_until_ready(
        dummy_embedder_forward(x, iteration=0, input_dim=input_dim,
                               use_pallas=True))
    assert out1.shape == x.shape and out1.dtype == x.dtype
    assert bool(jnp.array_equal(out1, x))

    # 3) Pallas path, multi-chunk parallel DMA (512 KiB -> 2 chunks).
    x2 = jax.random.normal(jax.random.PRNGKey(0), (8192, 16),
                           dtype=jnp.float32)
    out2 = jax.block_until_ready(
        dummy_embedder_forward(x2, iteration=1, input_dim=16,
                               use_pallas=True))
    assert out2.shape == x2.shape and out2.dtype == x2.dtype
    assert bool(jnp.array_equal(out2, x2))

    # 4) Awkward total (6*5*7 = 210, not a multiple of 128): whole-ref DMA.
    x3 = jax.random.normal(jax.random.PRNGKey(0), (6, 5, 7),
                           dtype=jnp.float32)
    out3 = jax.block_until_ready(
        dummy_embedder_forward(x3, iteration=3, input_dim=7,
                               use_pallas=True))
    assert out3.shape == x3.shape and out3.dtype == x3.dtype
    assert bool(jnp.array_equal(out3, x3))

    print("KERNEL_OK")
</pallas_src>

<mosaic_0001>
module attributes {stable_mosaic.version = 11 : i64} {
  func.func @_dma_copy_kernel(%arg0: i32, %arg1: memref<2x1024xf32, #tpu.memory_space<any>>, %arg2: memref<2x1024xf32, #tpu.memory_space<any>>, %arg3: memref<!tpu.dma_semaphore, #tpu.memory_space<semaphore_mem>>) attributes {dimension_semantics = [#tpu.dimension_semantics<parallel>], iteration_bounds = array<i64: 1>, scalar_prefetch = 0 : i64, scratch_operands = 1 : i64, tpu.core_type = #tpu.core_type<tc>, window_params = [{}, {}]} {
    tpu.enqueue_dma source(%arg1 : memref<2x1024xf32, #tpu.memory_space<any>>) target(%arg2 : memref<2x1024xf32, #tpu.memory_space<any>>) target_semaphore(%arg3 : memref<!tpu.dma_semaphore, #tpu.memory_space<semaphore_mem>>)
    tpu.wait_dma2 semaphore(%arg3 : memref<!tpu.dma_semaphore, #tpu.memory_space<semaphore_mem>>) src(%arg1 : memref<2x1024xf32, #tpu.memory_space<any>>) dst(%arg2 : memref<2x1024xf32, #tpu.memory_space<any>>)
    return
  }
}

</mosaic_0001>

<llo_original>
// kernel: _identity_copy.1
$region0: #{_identity_copy.1}
  #allocation0 [shape = 'u32[]', space=smem, size = 0x4, offset = 0x4, fixed_abs, tag = 'smem constant byte address 0x4 - core index']
  #allocation1 [shape = 'u32[144,128]{1,0:T(1,128)}', space=vmem, size = 0x12000, scoped, tag = 'internal scratch']
  #allocation2 [shape = 's32[1]{0}', space=sflag, size = 0x4, scoped, tag = 'scratch operand']
  #allocation3 [shape = 's32[]', space=sflag, size = 0x4, offset = 0, fixed_abs, tag = 'sflag constant byte address 0x0 - dummy sync flag']
  %s0 = inlined_call_operand.vmem [shape: f32[2,1024], index: 0, kind: input, shape index: {}]
  %s1 = inlined_call_operand.vmem [shape: f32[2,1024], index: 1, kind: output, shape index: {}]
  %s2 = sld [smem:[#allocation0]]
  $region36: #{_identity_copy.1} parent=0
    _
  %s4 = ssub.s32 1, %s2
  %s5 = scalar_select 0, %s4, %s2
  %p7 = scmp.lt.u32.totalorder 16, 8
  %p8 = pneg %p7
  // Predicated region
  $region2: #{_identity_copy.1} parent=0 // pred_check
    _
  $region3: #{_identity_copy.1} parent=0 // pred_check_branch
    %10 = sbr.rel (%p7) target = $region5
  $region4: #{_identity_copy.1} parent=0 // pred_region
    %s26 = sand.u32 16, 7
    %p27 = scmp.eq.s32.totalorder %s26, 0
    // Predicated region
    $region17: #{_identity_copy.1} parent=4 // pred_check
      %p28 = pneg %p27
    $region18: #{_identity_copy.1} parent=4 // pred_check_branch
      %30 = sbr.rel (%p28) target = $region20
    $region19: #{_identity_copy.1} parent=4 // pred_region
      loop: start=0, step=1, limit=1
      $region21: #{_identity_copy.1} parent=19 // loop_pre_header
        _
      $region22: #{_identity_copy.1} parent=19 // loop_header
        %s32 = sphi 0, %s36
        %p33 = scmp.ge.s32.totalorder %s32, 1
        %s37 = sphi %s0, %s0
        %s38 = sphi %s1, %s1
      $region23: #{_identity_copy.1} parent=19 // loop_header_branch
        %35 = sbr.rel (%p33) target = $region27
      $region24: #{_identity_copy.1} parent=19 // loop_body
        %v39 = vld [vmem:[%s37] sm:$0xff]
        %40 = vst [vmem:[%s38] sm:$0xff] %v39
        %v41 = vld [vmem:[%s37 + $0x8] sm:$0xff]
        %42 = vst [vmem:[%s38 + $0x8] sm:$0xff] %v41
      $region25: #{_identity_copy.1} parent=19 // loop_footer
        %s36 = sadd.s32 1, %s32
      $region26: #{_identity_copy.1} parent=19 // loop_footer_branch
        %31 = sbr.rel target = $region22
      $region27: #{_identity_copy.1} parent=19 // loop_exit
        _
    $region20: #{_identity_copy.1} parent=4 // pred_fallthru
      _
    %p43 = pneg %p27
    // Predicated region
    $region28: #{_identity_copy.1} parent=4 // pred_check
      _
    $region29: #{_identity_copy.1} parent=4 // pred_check_branch
      %45 = sbr.rel (%p27) target = $region31
    $region30: #{_identity_copy.1} parent=4 // pred_region
      %s46 = sand.u32 16, 7
    $region31: #{_identity_copy.1} parent=4 // pred_fallthru
      _
  $region5: #{_identity_copy.1} parent=0 // pred_fallthru
    _
  // Predicated region
  $region6: #{_identity_copy.1} parent=0 // pred_check
    %p11 = pneg %p7
  $region7: #{_identity_copy.1} parent=0 // pred_check_branch
    %13 = sbr.rel (%p11) target = $region9
  $region8: #{_identity_copy.1} parent=0 // pred_region
    %s14 = sshll.u32 1, 16
    %s15 = ssub.s32 %s14, 1
    loop: start=0, step=1, limit=1
    $region10: #{_identity_copy.1} parent=8 // loop_pre_header
      _
    $region11: #{_identity_copy.1} parent=8 // loop_header
      %s17 = sphi 0, %s21
      %p18 = scmp.ge.s32.totalorder %s17, 1
      %s22 = sphi %s0, %s0
      %s23 = sphi %s1, %s1
    $region12: #{_identity_copy.1} parent=8 // loop_header_branch
      %20 = sbr.rel (%p18) target = $region16
    $region13: #{_identity_copy.1} parent=8 // loop_body
      %v24 = vld [vmem:[%s22] sm:%s15]
      %25 = vst [vmem:[%s23] sm:%s15] %v24
    $region14: #{_identity_copy.1} parent=8 // loop_footer
      %s21 = sadd.s32 1, %s17
    $region15: #{_identity_copy.1} parent=8 // loop_footer_branch
      %16 = sbr.rel target = $region11
    $region16: #{_identity_copy.1} parent=8 // loop_exit
      _
  $region9: #{_identity_copy.1} parent=0 // pred_fallthru
    _
  // Predicated region
  $region32: #{_identity_copy.1} parent=0 // pred_check
    _
  $region33: #{_identity_copy.1} parent=0 // pred_check_branch
    %49 = sbr.rel (0) target = $region35
  $region34: #{_identity_copy.1} parent=0 // pred_region
    %50 = vsyncadd [#allocation2], 256
  $region35: #{_identity_copy.1} parent=0 // pred_fallthru
    _
  %s51 = smul.u32 2, 1
  %s52 = smul.u32 %s51, 8
  %s53 = sshll.u32 %s52, 4
  %54 = dma.done [#allocation2], %s53
  %55 = vsyncmov [#allocation2]
  %s56 = vpop.sfrf %55
  %p57 = scmp.eq.s32.totalorder %s56, 0
  %p58 = pneg %p57
  %60 = shalt.err (%p58)

</llo_original>
